<compile_context>
chip_gen: v5e
topology: v5e:2x2
jax: 0.10.0
libtpu: 0.0.40
codegen_flags: <defaults>
</compile_context>

<pallas_src>
import functools
import math

import jax
import jax.numpy as jnp
from jax.experimental import pallas as pl
from jax.experimental.pallas import tpu as pltpu

LN2 = 0.69314718  # constant used by the reference rbf()


def _rbf_r3_kernel(scale_ref, x4_ref, sel_ref, grid_e_ref, coeffs_e_ref, o_ref):
    """One tile of Q-packed edges.

    scale_ref   : SMEM (1,)        f32  -- ln2 / width**2
    x4_ref      : VMEM (R, Q)      f32  -- Q consecutive edges packed per row
    sel_ref     : VMEM (Q, Q*G)    f32  -- selection matrix, sel[j, Q*g + j] = 1
    grid_e_ref  : VMEM (1, Q*G)    f32  -- grid point g repeated at lanes Q*g + j
    coeffs_e_ref: VMEM (Q*G, Q*C)  f32  -- coeffs, block-expanded over the Q slots
    o_ref       : VMEM (R, Q*C)    f32  -- lane-dense output tile
                                           (row-major view of [R*Q, C])
    """
    neg_scale = -scale_ref[0]

    # Broadcast each packed edge across its G grid slots with a tiny MXU matmul
    # (exact: one 1.0 per column), avoiding any in-kernel reshape / relayout.
    x_b = jnp.dot(x4_ref[...], sel_ref[...],
                  preferred_element_type=jnp.float32)          # [R, Q*G]

    d = x_b - grid_e_ref[...]                                  # x - grid  [R, Q*G]
    p = jnp.exp(d * d * neg_scale)                             # rbf       [R, Q*G]

    # p @ expanded-coeffs yields the row-major-packed [R, Q*C] output directly,
    # so the HBM writeback is a full-width (128-lane) unmasked store.
    o_ref[...] = jnp.dot(p, coeffs_e_ref[...],
                         preferred_element_type=jnp.float32).astype(o_ref.dtype)


def _pack_constants(grid, coeffs, q):
    """Host/wrapper-side expansion of the tiny RBF constants for lane packing."""
    g = grid.shape[0]
    c = coeffs.shape[1]
    grid_flat = grid.reshape(-1).astype(jnp.float32)

    # sel[j, q*gi + j] = 1, else 0.
    sel = jnp.tile(jnp.eye(q, dtype=jnp.float32), (1, g))                 # [Q, Q*G]
    # grid_e[0, q*gi + j] = grid[gi]
    grid_e = jnp.repeat(grid_flat, q)[None, :]                            # [1, Q*G]
    # coeffs_e[q*gi + j, c*j' + k] = coeffs[gi, k] if j == j' else 0.
    coeffs_e = (coeffs.astype(jnp.float32)[:, None, None, :]
                * jnp.eye(q, dtype=jnp.float32)[None, :, :, None])
    coeffs_e = coeffs_e.reshape(q * g, q * c)                             # [Q*G, Q*C]
    return sel, grid_e, coeffs_e


@functools.partial(jax.jit, static_argnames=("tile_n",))
def rbf_r3_forward(x, grid, coeffs, inv_scale, tile_n=1024):
    """x: [N, 1] (or [N]) f32, grid: [G, 1] f32, coeffs: [G, C] f32 -> [N, C] f32."""
    x_flat = x.reshape(-1).astype(jnp.float32)       # domain_dim == 1 for RBF_R3
    n = x_flat.shape[0]
    g = grid.reshape(-1).shape[0]
    c = coeffs.shape[1]

    # Lane packing factor: pack Q consecutive edges per output row so the stored
    # row is Q*C lanes wide (128 when C divides 128).  Fallback Q=1 is still correct.
    q = 128 // c if (c <= 128 and 128 % c == 0) else 1

    # Keep the sublane dim of every block a multiple of 8.
    tile_n = ((tile_n + 8 * q - 1) // (8 * q)) * (8 * q)

    # Pad N up to a multiple of the tile (no `N % tile_n == 0` restriction).
    num_tiles = pl.cdiv(n, tile_n)
    n_pad = num_tiles * tile_n
    if n_pad != n:
        x_flat = jnp.pad(x_flat, (0, n_pad - n))

    r = tile_n // q                                   # output rows per tile
    x4 = x_flat.reshape(n_pad // q, q)                # free row-major repack of x

    sel, grid_e, coeffs_e = _pack_constants(grid, coeffs, q)
    scale_arr = jnp.asarray(inv_scale, dtype=jnp.float32).reshape(1)

    out_packed = pl.pallas_call(
        _rbf_r3_kernel,
        out_shape=jax.ShapeDtypeStruct((n_pad // q, q * c), jnp.float32),
        grid=(num_tiles,),
        in_specs=[
            pl.BlockSpec(memory_space=pltpu.MemorySpace.SMEM),   # scale (scalar)
            pl.BlockSpec((r, q), lambda i: (i, 0)),              # x tile (packed)
            pl.BlockSpec((q, q * g), lambda i: (0, 0)),          # selection (whole)
            pl.BlockSpec((1, q * g), lambda i: (0, 0)),          # expanded grid (whole)
            pl.BlockSpec((q * g, q * c), lambda i: (0, 0)),      # expanded coeffs (whole)
        ],
        out_specs=pl.BlockSpec((r, q * c), lambda i: (i, 0)),
        compiler_params=pltpu.CompilerParams(
            dimension_semantics=("parallel",)
        ),
    )(scale_arr, x4, sel, grid_e, coeffs_e)

    out = out_packed.reshape(n_pad, c)                # free view back to [N_pad, C]
    if n_pad != n:
        out = out[:n]
    return out


def make_rbf_r3_params(radius, n_x, codomain_dim, key):
    """Deterministic replication of RBF_euclidean.__init__ in plain JAX."""
    # TODO(synk): the linear solve / width setup is __init__-time work and is done
    # with jnp.linalg (XLA), not inside the Pallas kernel.
    grid = jnp.linspace(0.0, radius, n_x, dtype=jnp.float32)[:, None]     # [G, 1]
    weight = jax.random.normal(key, (n_x, codomain_dim), dtype=jnp.float32)

    pd = jnp.linalg.norm(grid[:, None, :] - grid[None, :, :], axis=-1)    # [G, G]
    width = jnp.mean(jnp.sort(pd, axis=-1)[:, 1])

    m = jnp.exp(-(pd ** 2) / (width ** 2 / LN2))                          # [G, G]
    coeffs = jnp.linalg.solve(m, weight)                                  # [G, C]
    return grid, width, coeffs


def rbf_r3_reference(x, grid, width, coeffs):
    """Pure-JAX reference matching the PyTorch forward exactly."""
    d = jnp.linalg.norm(x[:, None, :] - grid[None, :, :], axis=-1)        # [N, G]
    p = jnp.exp(-(d ** 2) / (width ** 2 / LN2))
    return p @ coeffs


if __name__ == "__main__":
    # Deterministic configuration (kept small, but with enough edges that the
    # grid has >= 8 steps so both v7x TensorCores get work with 1024-row tiles).
    radius = 5.0
    n_x = 16            # number of grid points (G)
    codomain_dim = 32   # output feature dim (C)
    n_edges = 8192      # number of edges (N)
    domain_dim = 1      # radial RBF over R (D)

    key = jax.random.PRNGKey(0)
    k_w, k_x = jax.random.split(key)

    grid, width, coeffs = make_rbf_r3_params(radius, n_x, codomain_dim, k_w)

    # edge_attr_relpos_r3: [N, 1] radial distances in [0, radius]
    x = jax.random.uniform(
        k_x, (n_edges, domain_dim), dtype=jnp.float32, minval=0.0, maxval=radius
    )

    inv_scale = LN2 / (width ** 2)

    out = rbf_r3_forward(x, grid, coeffs, inv_scale, tile_n=1024)
    out = jax.block_until_ready(out)

    ref = rbf_r3_reference(x, grid, width, coeffs)
    assert out.shape == (n_edges, codomain_dim)
    assert jnp.allclose(out, ref, atol=1e-4, rtol=1e-4), (
        f"max abs err {jnp.max(jnp.abs(out - ref))}"
    )

    print("KERNEL_OK")
</pallas_src>

<mosaic_0001>
module attributes {stable_mosaic.version = 11 : i64} {
  func.func @_rbf_r3_kernel(%arg0: i32, %arg1: memref<1xf32, #tpu.memory_space<smem>>, %arg2: memref<256x4xf32, #tpu.memory_space<vmem>>, %arg3: memref<4x64xf32, #tpu.memory_space<vmem>>, %arg4: memref<1x64xf32, #tpu.memory_space<vmem>>, %arg5: memref<64x128xf32, #tpu.memory_space<vmem>>, %arg6: memref<256x128xf32, #tpu.memory_space<vmem>>) attributes {dimension_semantics = [#tpu.dimension_semantics<parallel>], iteration_bounds = array<i64: 8>, scalar_prefetch = 0 : i64, scratch_operands = 0 : i64, tpu.core_type = #tpu.core_type<tc>, window_params = [{transform_indices = @transform_0, window_bounds = array<i64: 1>}, {transform_indices = @transform_1, window_bounds = array<i64: 256, 4>}, {pipeline_mode = #tpu.pipeline_mode<synchronous>, transform_indices = @transform_2, window_bounds = array<i64: 4, 64>}, {pipeline_mode = #tpu.pipeline_mode<synchronous>, transform_indices = @transform_3, window_bounds = array<i64: 1, 64>}, {pipeline_mode = #tpu.pipeline_mode<synchronous>, transform_indices = @transform_4, window_bounds = array<i64: 64, 128>}, {transform_indices = @transform_5, window_bounds = array<i64: 256, 128>}]} {
    %c0 = arith.constant 0 : index
    %0 = memref.load %arg1[%c0] : memref<1xf32, #tpu.memory_space<smem>>
    %cst = arith.constant 0.000000e+00 : f32
    %1 = arith.subf %cst, %0 : f32
    %c0_0 = arith.constant 0 : index
    %c0_1 = arith.constant 0 : index
    %2 = vector.load %arg2[%c0_0, %c0_1] : memref<256x4xf32, #tpu.memory_space<vmem>>, vector<256x4xf32>
    %c0_2 = arith.constant 0 : index
    %c0_3 = arith.constant 0 : index
    %3 = vector.load %arg3[%c0_2, %c0_3] : memref<4x64xf32, #tpu.memory_space<vmem>>, vector<4x64xf32>
    %cst_4 = arith.constant dense<0.000000e+00> : vector<256x64xf32>
    %4 = tpu.matmul %2, %3, %cst_4 {dimension_numbers = #tpu.dot_dimension_numbers<[1], [0], [0], [1], [0, 0, 1, 1], [], []>} : vector<256x4xf32>, vector<4x64xf32>, vector<256x64xf32> -> vector<256x64xf32>
    %c0_5 = arith.constant 0 : index
    %c0_6 = arith.constant 0 : index
    %5 = vector.load %arg4[%c0_5, %c0_6] : memref<1x64xf32, #tpu.memory_space<vmem>>, vector<1x64xf32>
    %6 = vector.broadcast %5 : vector<1x64xf32> to vector<256x64xf32>
    %7 = arith.subf %4, %6 : vector<256x64xf32>
    %8 = arith.mulf %7, %7 : vector<256x64xf32>
    %9 = vector.broadcast %1 : f32 to vector<256x64xf32>
    %10 = arith.mulf %8, %9 : vector<256x64xf32>
    %11 = math.exp %10 : vector<256x64xf32>
    %c0_7 = arith.constant 0 : index
    %c0_8 = arith.constant 0 : index
    %12 = vector.load %arg5[%c0_7, %c0_8] : memref<64x128xf32, #tpu.memory_space<vmem>>, vector<64x128xf32>
    %cst_9 = arith.constant dense<0.000000e+00> : vector<256x128xf32>
    %13 = tpu.matmul %11, %12, %cst_9 {dimension_numbers = #tpu.dot_dimension_numbers<[1], [0], [0], [1], [0, 0, 1, 1], [], []>} : vector<256x64xf32>, vector<64x128xf32>, vector<256x128xf32> -> vector<256x128xf32>
    %c0_10 = arith.constant 0 : index
    %c0_11 = arith.constant 0 : index
    %14 = vector.load %arg6[%c0_10, %c0_11] : memref<256x128xf32, #tpu.memory_space<vmem>>, vector<256x128xf32>
    tpu.vector_store %arg6[%c0_10, %c0_11], %13 {strides = array<i32>} : memref<256x128xf32, #tpu.memory_space<vmem>>, vector<256x128xf32>,
    return
  }
  func.func @transform_0(%arg0: i32) -> i32 {
    %c0_i32 = arith.constant 0 : i32
    %c0_i32_0 = arith.constant 0 : i32
    return %c0_i32 : i32
  }
  func.func @transform_1(%arg0: i32) -> (i32, i32) {
    %c0_i32 = arith.constant 0 : i32
    %c0_i32_0 = arith.constant 0 : i32
    return %arg0, %c0_i32 : i32, i32
  }
  func.func @transform_2(%arg0: i32) -> (i32, i32) {
    %c0_i32 = arith.constant 0 : i32
    %c0_i32_0 = arith.constant 0 : i32
    %c0_i32_1 = arith.constant 0 : i32
    return %c0_i32, %c0_i32_0 : i32, i32
  }
  func.func @transform_3(%arg0: i32) -> (i32, i32) {
    %c0_i32 = arith.constant 0 : i32
    %c0_i32_0 = arith.constant 0 : i32
    %c0_i32_1 = arith.constant 0 : i32
    return %c0_i32, %c0_i32_0 : i32, i32
  }
  func.func @transform_4(%arg0: i32) -> (i32, i32) {
    %c0_i32 = arith.constant 0 : i32
    %c0_i32_0 = arith.constant 0 : i32
    %c0_i32_1 = arith.constant 0 : i32
    return %c0_i32, %c0_i32_0 : i32, i32
  }
  func.func @transform_5(%arg0: i32) -> (i32, i32) {
    %c0_i32 = arith.constant 0 : i32
    %c0_i32_0 = arith.constant 0 : i32
    return %arg0, %c0_i32 : i32, i32
  }
}

</mosaic_0001>

<llo_original>
// kernel: tile.9
$region0: #{tile.9}
  %s0 = inlined_call_operand.vmem [shape: f32[4,16,4], index: 0, kind: input, shape index: {}]
  %s1 = inlined_call_operand.vmem [shape: f32[4,64], index: 1, kind: output, shape index: {}]
  $region1: #{tile.9} parent=0
    #allocation0 [shape = 'u8[4096]{0}', space=vmem, size = 0x1000, scoped, tag = 'scoped mem for output reshape']
    %s2 = smov 3
    %v3 = vld [vmem:[%s0] ss:$16 sm:%s2]
    %s4 = smov 12
    %v5 = vld [vmem:[%s0] ss:$16 sm:%s4]
    %vm6 = vcmask 1043458
    %v7 = vsel %vm6, %v5, %v3
    %vm8 = vcmask 31744
    %9 = vst.msk [vmem:[#allocation0] sm:$0xf] %vm8, %v7
    %s10 = scalar_lea.vmem %s0, 15
    %s11 = smov 3
    %v12 = vld [vmem:[%s10] ss:$16 sm:%s11]
    %s13 = scalar_lea.vmem %s0, 15
    %s14 = smov 12
    %v15 = vld [vmem:[%s13] ss:$16 sm:%s14]
    %vm16 = vcmask 1043458
    %v17 = vsel %vm16, %v15, %v12
    %18 = vrot.lane.b32.xlu0 %v17, 60
    %v19 = vpop.permute.xlu0 %18
    %vm20 = vcmask 523744
    %21 = vst.msk [vmem:[#allocation0] sm:$0xf] %vm20, %v19
    %s22 = scalar_lea.vmem %s0, 14
    %s23 = smov 3
    %v24 = vld [vmem:[%s22] ss:$16 sm:%s23]
    %s25 = scalar_lea.vmem %s0, 14
    %s26 = smov 12
    %v27 = vld [vmem:[%s25] ss:$16 sm:%s26]
    %vm28 = vcmask 1043458
    %v29 = vsel %vm28, %v27, %v24
    %30 = vrot.lane.b32.xlu0 %v29, 56
    %v31 = vpop.permute.xlu0 %30
    %vm32 = vcmask 490944
    %33 = vst.msk [vmem:[#allocation0] sm:$0xf] %vm32, %v31
    %s34 = scalar_lea.vmem %s0, 13
    %s35 = smov 3
    %v36 = vld [vmem:[%s34] ss:$16 sm:%s35]
    %s37 = scalar_lea.vmem %s0, 13
    %s38 = smov 12
    %v39 = vld [vmem:[%s37] ss:$16 sm:%s38]
    %vm40 = vcmask 1043458
    %v41 = vsel %vm40, %v39, %v36
    %42 = vrot.lane.b32.xlu0 %v41, 52
    %v43 = vpop.permute.xlu0 %42
    %vm44 = vcmask 458144
    %45 = vst.msk [vmem:[#allocation0] sm:$0xf] %vm44, %v43
    %s46 = scalar_lea.vmem %s0, 12
    %s47 = smov 3
    %v48 = vld [vmem:[%s46] ss:$16 sm:%s47]
    %s49 = scalar_lea.vmem %s0, 12
    %s50 = smov 12
    %v51 = vld [vmem:[%s49] ss:$16 sm:%s50]
    %vm52 = vcmask 1043458
    %v53 = vsel %vm52, %v51, %v48
    %54 = vrot.lane.b32.xlu0 %v53, 48
    %v55 = vpop.permute.xlu0 %54
    %vm56 = vcmask 425344
    %57 = vst.msk [vmem:[#allocation0] sm:$0xf] %vm56, %v55
    %s58 = scalar_lea.vmem %s0, 11
    %s59 = smov 3
    %v60 = vld [vmem:[%s58] ss:$16 sm:%s59]
    %s61 = scalar_lea.vmem %s0, 11
    %s62 = smov 12
    %v63 = vld [vmem:[%s61] ss:$16 sm:%s62]
    %vm64 = vcmask 1043458
    %v65 = vsel %vm64, %v63, %v60
    %66 = vrot.lane.b32.xlu0 %v65, 44
    %v67 = vpop.permute.xlu0 %66
    %vm68 = vcmask 392544
    %69 = vst.msk [vmem:[#allocation0] sm:$0xf] %vm68, %v67
    %s70 = scalar_lea.vmem %s0, 10
    %s71 = smov 3
    %v72 = vld [vmem:[%s70] ss:$16 sm:%s71]
    %s73 = scalar_lea.vmem %s0, 10
    %s74 = smov 12
    %v75 = vld [vmem:[%s73] ss:$16 sm:%s74]
    %vm76 = vcmask 1043458
    %v77 = vsel %vm76, %v75, %v72
    %78 = vrot.lane.b32.xlu0 %v77, 40
    %v79 = vpop.permute.xlu0 %78
    %vm80 = vcmask 359744
    %81 = vst.msk [vmem:[#allocation0] sm:$0xf] %vm80, %v79
    %s82 = scalar_lea.vmem %s0, 9
    %s83 = smov 3
    %v84 = vld [vmem:[%s82] ss:$16 sm:%s83]
    %s85 = scalar_lea.vmem %s0, 9
    %s86 = smov 12
    %v87 = vld [vmem:[%s85] ss:$16 sm:%s86]
    %vm88 = vcmask 1043458
    %v89 = vsel %vm88, %v87, %v84
    %90 = vrot.lane.b32.xlu0 %v89, 36
    %v91 = vpop.permute.xlu0 %90
    %vm92 = vcmask 326944
    %93 = vst.msk [vmem:[#allocation0] sm:$0xf] %vm92, %v91
    %s94 = scalar_lea.vmem %s0, 8
    %s95 = smov 3
    %v96 = vld [vmem:[%s94] ss:$16 sm:%s95]
    %s97 = scalar_lea.vmem %s0, 8
    %s98 = smov 12
    %v99 = vld [vmem:[%s97] ss:$16 sm:%s98]
    %vm100 = vcmask 1043458
    %v101 = vsel %vm100, %v99, %v96
    %102 = vrot.lane.b32.xlu0 %v101, 32
    %v103 = vpop.permute.xlu0 %102
    %vm104 = vcmask 294144
    %105 = vst.msk [vmem:[#allocation0] sm:$0xf] %vm104, %v103
    %s106 = scalar_lea.vmem %s0, 7
    %s107 = smov 3
    %v108 = vld [vmem:[%s106] ss:$16 sm:%s107]
    %s109 = scalar_lea.vmem %s0, 7
    %s110 = smov 12
    %v111 = vld [vmem:[%s109] ss:$16 sm:%s110]
    %vm112 = vcmask 1043458
    %v113 = vsel %vm112, %v111, %v108
    %114 = vrot.lane.b32.xlu0 %v113, 28
    %v115 = vpop.permute.xlu0 %114
    %vm116 = vcmask 261344
    %117 = vst.msk [vmem:[#allocation0] sm:$0xf] %vm116, %v115
    %s118 = scalar_lea.vmem %s0, 6
    %s119 = smov 3
    %v120 = vld [vmem:[%s118] ss:$16 sm:%s119]
    %s121 = scalar_lea.vmem %s0, 6
    %s122 = smov 12
    %v123 = vld [vmem:[%s121] ss:$16 sm:%s122]
    %vm124 = vcmask 1043458
    %v125 = vsel %vm124, %v123, %v120
    %126 = vrot.lane.b32.xlu0 %v125, 24
    %v127 = vpop.permute.xlu0 %126
    %vm128 = vcmask 228544
    %129 = vst.msk [vmem:[#allocation0] sm:$0xf] %vm128, %v127
    %s130 = scalar_lea.vmem %s0, 5
    %s131 = smov 3
    %v132 = vld [vmem:[%s130] ss:$16 sm:%s131]
    %s133 = scalar_lea.vmem %s0, 5
    %s134 = smov 12
    %v135 = vld [vmem:[%s133] ss:$16 sm:%s134]
    %vm136 = vcmask 1043458
    %v137 = vsel %vm136, %v135, %v132
    %138 = vrot.lane.b32.xlu0 %v137, 20
    %v139 = vpop.permute.xlu0 %138
    %vm140 = vcmask 195744
    %141 = vst.msk [vmem:[#allocation0] sm:$0xf] %vm140, %v139
    %s142 = scalar_lea.vmem %s0, 4
    %s143 = smov 3
    %v144 = vld [vmem:[%s142] ss:$16 sm:%s143]
    %s145 = scalar_lea.vmem %s0, 4
    %s146 = smov 12
    %v147 = vld [vmem:[%s145] ss:$16 sm:%s146]
    %vm148 = vcmask 1043458
    %v149 = vsel %vm148, %v147, %v144
    %150 = vrot.lane.b32.xlu0 %v149, 16
    %v151 = vpop.permute.xlu0 %150
    %vm152 = vcmask 162944
    %153 = vst.msk [vmem:[#allocation0] sm:$0xf] %vm152, %v151
    %s154 = scalar_lea.vmem %s0, 3
    %s155 = smov 3
    %v156 = vld [vmem:[%s154] ss:$16 sm:%s155]
    %s157 = scalar_lea.vmem %s0, 3
    %s158 = smov 12
    %v159 = vld [vmem:[%s157] ss:$16 sm:%s158]
    %vm160 = vcmask 1043458
    %v161 = vsel %vm160, %v159, %v156
    %162 = vrot.lane.b32.xlu0 %v161, 12
    %v163 = vpop.permute.xlu0 %162
    %vm164 = vcmask 130144
    %165 = vst.msk [vmem:[#allocation0] sm:$0xf] %vm164, %v163
    %s166 = scalar_lea.vmem %s0, 2
    %s167 = smov 3
    %v168 = vld [vmem:[%s166] ss:$16 sm:%s167]
    %s169 = scalar_lea.vmem %s0, 2
    %s170 = smov 12
    %v171 = vld [vmem:[%s169] ss:$16 sm:%s170]
    %vm172 = vcmask 1043458
    %v173 = vsel %vm172, %v171, %v168
    %174 = vrot.lane.b32.xlu0 %v173, 8
    %v175 = vpop.permute.xlu0 %174
    %vm176 = vcmask 97344
    %177 = vst.msk [vmem:[#allocation0] sm:$0xf] %vm176, %v175
    %s178 = scalar_lea.vmem %s0, 1
    %s179 = smov 3
    %v180 = vld [vmem:[%s178] ss:$16 sm:%s179]
    %s181 = scalar_lea.vmem %s0, 1
    %s182 = smov 12
    %v183 = vld [vmem:[%s181] ss:$16 sm:%s182]
    %vm184 = vcmask 1043458
    %v185 = vsel %vm184, %v183, %v180
    %186 = vrot.lane.b32.xlu0 %v185, 4
    %v187 = vpop.permute.xlu0 %186
    %vm188 = vcmask 64544
    %189 = vst.msk [vmem:[#allocation0] sm:$0xf] %vm188, %v187
    %s191 = ssub.s32 16, 1
    %v192 = vld [vmem:[#allocation0] sm:%s191]
    %s194 = ssub.s32 16, 1
    %195 = vst [vmem:[%s1] sm:%s194] %v192

// kernel: rbf_r3_forward.1
$region0: #{rbf_r3_forward.1}
  #allocation0 [shape = 'u32[]', space=smem, size = 0x4, offset = 0x4, fixed_abs, tag = 'smem constant byte address 0x4 - core index']
  #allocation1 [shape = 'u32[72,128]{1,0:T(1,128)}', space=vmem, size = 0x9000, scoped, tag = 'internal scratch']
  #allocation2 [shape = 'f32[1]{0:T(128)S(6)}', space=smem, size = 0x200, scoped, tag = 'scoped memory for rbf_r3_forward.1']
  %s0 = inlined_call_operand.<no memory space> [shape: f32[1], index: 0, kind: input, shape index: {}]
  %s1 = inlined_call_operand.vmem [shape: f32[2048,4], index: 1, kind: input, shape index: {}]
  %s2 = inlined_call_operand.vmem [shape: f32[4,64], index: 2, kind: input, shape index: {}]
  %s3 = inlined_call_operand.vmem [shape: f32[1,64], index: 3, kind: input, shape index: {}]
  %s4 = inlined_call_operand.vmem [shape: f32[64,128], index: 4, kind: input, shape index: {}]
  %s5 = inlined_call_operand.vmem [shape: f32[2048,128], index: 5, kind: output, shape index: {}]
  %s6 = sld [smem:[#allocation0]]
  $region53: #{rbf_r3_forward.1} parent=0
    _
  %s8 = ssub.s32 1, %s6
  %s9 = scalar_select 0, %s8, %s6
  %10 = sst [smem:[#allocation2]] %s0
  loop: start=0, step=1, limit=10
  $region2: #{rbf_r3_forward.1} parent=0 // loop_pre_header
    _
  $region3: #{rbf_r3_forward.1} parent=0 // loop_header
    %s12 = sphi 0, %s16
    %p13 = scmp.ge.s32.totalorder %s12, 10
    %s20 = sphi 0, %s20
    %s22 = sphi 0, %s20
    %s23 = sphi 0, %s22
    %s37 = sphi 0, %s23
    %s43 = sphi 0, %s45
    %s46 = sphi 0, %s43
    %s47 = sphi 0, %s46
    %s63 = sphi 0, %s47
    %s67 = sphi 0, %s67
    %s69 = sphi 0, %s67
    %s70 = sphi 0, %s69
    %s84 = sphi 0, %s70
    %s88 = sphi 0, %s88
    %s90 = sphi 0, %s88
    %s91 = sphi 0, %s90
    %s105 = sphi 0, %s91
    %s109 = sphi 0, %s109
    %s111 = sphi 0, %s109
    %s112 = sphi 0, %s111
    %s126 = sphi 0, %s112
    %s132 = sphi 0, %s134
    %s135 = sphi 0, %s132
    %s136 = sphi 0, %s135
    %s152 = sphi 0, %s136
  $region4: #{rbf_r3_forward.1} parent=0 // loop_header_branch
    %15 = sbr.rel (%p13) target = $region8
  $region5: #{rbf_r3_forward.1} parent=0 // loop_body
    %s17 = ssub.s32 %s12, 1
    %s18 = ssub.s32 %s12, 2
    %s19 = sadd.s32 %s12, 1
    %s21 = sadd.s32 %s20, 1
    %p24 = scmp.eq.s32.totalorder %s12, 7
    %p25 = scmp.ne.s32.totalorder %s20, %s22
    %p26 = scmp.eq.s32.totalorder %s12, 0
    %p27 = por %p25, %p26
    %p28 = scmp.ne.s32.totalorder %s20, %s22
    %p29 = scmp.eq.s32.totalorder %s17, 7
    %p30 = por %p28, %p29
    %p31 = scmp.ne.s32.totalorder %s22, %s23
    %p32 = scmp.eq.s32.totalorder %s17, 0
    %p33 = por %p31, %p32
    %p34 = scmp.ne.s32.totalorder %s22, %s23
    %p35 = scmp.eq.s32.totalorder %s18, 7
    %p36 = por %p34, %p35
    %p38 = scmp.ne.s32.totalorder %s23, %s37
    %p39 = scmp.eq.s32.totalorder %s18, 0
    %p40 = por %p38, %p39
    %s41 = ssub.s32 %s12, %s19
    %p42 = scmp.eq.s32.totalorder %s41, 0
    %s44 = sadd.s32 %s43, 1
    %s45 = scalar_select %p42, %s43, %s44
    %p48 = pneg %p42
    %p49 = scmp.eq.s32.totalorder %s12, 7
    %p50 = por %p48, %p49
    %p51 = scmp.ne.s32.totalorder %s43, %s46
    %p52 = scmp.eq.s32.totalorder %s12, 0
    %p53 = por %p51, %p52
    %p54 = scmp.ne.s32.totalorder %s43, %s46
    %p55 = scmp.eq.s32.totalorder %s17, 7
    %p56 = por %p54, %p55
    %p57 = scmp.ne.s32.totalorder %s46, %s47
    %p58 = scmp.eq.s32.totalorder %s17, 0
    %p59 = por %p57, %p58
    %p60 = scmp.ne.s32.totalorder %s46, %s47
    %p61 = scmp.eq.s32.totalorder %s18, 7
    %p62 = por %p60, %p61
    %p64 = scmp.ne.s32.totalorder %s47, %s63
    %p65 = scmp.eq.s32.totalorder %s18, 0
    %p66 = por %p64, %p65
    %s68 = sadd.s32 %s67, 1
    %p71 = scmp.eq.s32.totalorder %s12, 7
    %p72 = scmp.ne.s32.totalorder %s67, %s69
    %p73 = scmp.eq.s32.totalorder %s12, 0
    %p74 = por %p72, %p73
    %p75 = scmp.ne.s32.totalorder %s67, %s69
    %p76 = scmp.eq.s32.totalorder %s17, 7
    %p77 = por %p75, %p76
    %p78 = scmp.ne.s32.totalorder %s69, %s70
    %p79 = scmp.eq.s32.totalorder %s17, 0
    %p80 = por %p78, %p79
    %p81 = scmp.ne.s32.totalorder %s69, %s70
    %p82 = scmp.eq.s32.totalorder %s18, 7
    %p83 = por %p81, %p82
    %p85 = scmp.ne.s32.totalorder %s70, %s84
    %p86 = scmp.eq.s32.totalorder %s18, 0
    %p87 = por %p85, %p86
    %s89 = sadd.s32 %s88, 1
    %p92 = scmp.eq.s32.totalorder %s12, 7
    %p93 = scmp.ne.s32.totalorder %s88, %s90
    %p94 = scmp.eq.s32.totalorder %s12, 0
    %p95 = por %p93, %p94
    %p96 = scmp.ne.s32.totalorder %s88, %s90
    %p97 = scmp.eq.s32.totalorder %s17, 7
    %p98 = por %p96, %p97
    %p99 = scmp.ne.s32.totalorder %s90, %s91
    %p100 = scmp.eq.s32.totalorder %s17, 0
    %p101 = por %p99, %p100
    %p102 = scmp.ne.s32.totalorder %s90, %s91
    %p103 = scmp.eq.s32.totalorder %s18, 7
    %p104 = por %p102, %p103
    %p106 = scmp.ne.s32.totalorder %s91, %s105
    %p107 = scmp.eq.s32.totalorder %s18, 0
    %p108 = por %p106, %p107
    %s110 = sadd.s32 %s109, 1
    %p113 = scmp.eq.s32.totalorder %s12, 7
    %p114 = scmp.ne.s32.totalorder %s109, %s111
    %p115 = scmp.eq.s32.totalorder %s12, 0
    %p116 = por %p114, %p115
    %p117 = scmp.ne.s32.totalorder %s109, %s111
    %p118 = scmp.eq.s32.totalorder %s17, 7
    %p119 = por %p117, %p118
    %p120 = scmp.ne.s32.totalorder %s111, %s112
    %p121 = scmp.eq.s32.totalorder %s17, 0
    %p122 = por %p120, %p121
    %p123 = scmp.ne.s32.totalorder %s111, %s112
    %p124 = scmp.eq.s32.totalorder %s18, 7
    %p125 = por %p123, %p124
    %p127 = scmp.ne.s32.totalorder %s112, %s126
    %p128 = scmp.eq.s32.totalorder %s18, 0
    %p129 = por %p127, %p128
    %s130 = ssub.s32 %s12, %s19
    %p131 = scmp.eq.s32.totalorder %s130, 0
    %s133 = sadd.s32 %s132, 1
    %s134 = scalar_select %p131, %s132, %s133
    %p137 = pneg %p131
    %p138 = scmp.eq.s32.totalorder %s12, 7
    %p139 = por %p137, %p138
    %p140 = scmp.ne.s32.totalorder %s132, %s135
    %p141 = scmp.eq.s32.totalorder %s12, 0
    %p142 = por %p140, %p141
    %p143 = scmp.ne.s32.totalorder %s132, %s135
    %p144 = scmp.eq.s32.totalorder %s17, 7
    %p145 = por %p143, %p144
    %p146 = scmp.ne.s32.totalorder %s135, %s136
    %p147 = scmp.eq.s32.totalorder %s17, 0
    %p148 = por %p146, %p147
    %p149 = scmp.ne.s32.totalorder %s135, %s136
    %p150 = scmp.eq.s32.totalorder %s18, 7
    %p151 = por %p149, %p150
    %p153 = scmp.ne.s32.totalorder %s136, %s152
    %p154 = scmp.eq.s32.totalorder %s18, 0
    %p155 = por %p153, %p154
    %p156 = scmp.le.s32.totalorder 1, %s12
    %p157 = scmp.lt.s32.totalorder %s12, 9
    %p158 = pnand %p156, %p157
    %p159 = pneg %p158
    // Predicated region
    $region9: #{rbf_r3_forward.1} parent=5 // pred_check
      _
    $region10: #{rbf_r3_forward.1} parent=5 // pred_check_branch
      %161 = sbr.rel (%p158) target = $region12
    $region11: #{rbf_r3_forward.1} parent=5 // pred_region
      %s162 = ssub.s32 %s12, 1
      // Predicated region
      $region13: #{rbf_r3_forward.1} parent=11 // pred_check
        %p163 = pneg %p33
      $region14: #{rbf_r3_forward.1} parent=11 // pred_check_branch
        %165 = sbr.rel (%p163) target = $region16
      $region15: #{rbf_r3_forward.1} parent=11 // pred_region
        _
      $region16: #{rbf_r3_forward.1} parent=11 // pred_fallthru
        _
      // Predicated region
      $region17: #{rbf_r3_forward.1} parent=11 // pred_check
        %p166 = pneg %p80
      $region18: #{rbf_r3_forward.1} parent=11 // pred_check_branch
        %168 = sbr.rel (%p166) target = $region20
      $region19: #{rbf_r3_forward.1} parent=11 // pred_region
        _
      $region20: #{rbf_r3_forward.1} parent=11 // pred_fallthru
        _
      // Predicated region
      $region21: #{rbf_r3_forward.1} parent=11 // pred_check
        %p169 = pneg %p101
      $region22: #{rbf_r3_forward.1} parent=11 // pred_check_branch
        %171 = sbr.rel (%p169) target = $region24
      $region23: #{rbf_r3_forward.1} parent=11 // pred_region
        _
      $region24: #{rbf_r3_forward.1} parent=11 // pred_fallthru
        _
      // Predicated region
      $region25: #{rbf_r3_forward.1} parent=11 // pred_check
        %p172 = pneg %p122
      $region26: #{rbf_r3_forward.1} parent=11 // pred_check_branch
        %174 = sbr.rel (%p172) target = $region28
      $region27: #{rbf_r3_forward.1} parent=11 // pred_region
        _
      $region28: #{rbf_r3_forward.1} parent=11 // pred_fallthru
        _
    $region12: #{rbf_r3_forward.1} parent=5 // pred_fallthru
      _
    %p175 = scmp.lt.s32.totalorder %s12, 8
    // Predicated region
    $region29: #{rbf_r3_forward.1} parent=5 // pred_check
      %p176 = pneg %p175
    $region30: #{rbf_r3_forward.1} parent=5 // pred_check_branch
      %178 = sbr.rel (%p176) target = $region32
    $region31: #{rbf_r3_forward.1} parent=5 // pred_region
      // Predicated region
      $region33: #{rbf_r3_forward.1} parent=31 // pred_check
        %p179 = pneg %p53
      $region34: #{rbf_r3_forward.1} parent=31 // pred_check_branch
        %181 = sbr.rel (%p179) target = $region36
      $region35: #{rbf_r3_forward.1} parent=31 // pred_region
        %s182 = smul.u32 32, %s12
        %p183 = scmp.lt.s32.totalorder %s182, 255
        %s184 = scalar_select %p183, %s182, 255
        %s185 = smul.addr %s184, 8
        %s186 = scalar_lea.vmem %s1, %s185
        %s187 = smul.u32 32, %s12
      $region36: #{rbf_r3_forward.1} parent=31 // pred_fallthru
        _
    $region32: #{rbf_r3_forward.1} parent=5 // pred_fallthru
      _
    %p188 = scmp.le.s32.totalorder 1, %s12
    %p189 = scmp.lt.s32.totalorder %s12, 9
    %p190 = pnand %p188, %p189
    %p191 = pneg %p190
    // Predicated region
    $region37: #{rbf_r3_forward.1} parent=5 // pred_check
      _
    $region38: #{rbf_r3_forward.1} parent=5 // pred_check_branch
      %193 = sbr.rel (%p190) target = $region40
    $region39: #{rbf_r3_forward.1} parent=5 // pred_region
      %s194 = ssub.s32 %s12, 1
      %p195 = pneg %p33
      %p196 = pneg %p30
      %s197 = smul.u32 32, %s17
      %p198 = scmp.lt.s32.totalorder %s197, 255
      %s199 = scalar_select %p198, %s197, 255
      %s200 = smul.addr %s199, 8
      %s201 = scalar_lea.vmem %s1, %s200
      %p202 = pneg %p59
      %p203 = pneg %p56
      %p204 = pneg %p80
      %p205 = pneg %p77
      %p206 = pneg %p101
      %p207 = pneg %p98
      %p208 = pneg %p122
      %p209 = pneg %p119
      %p210 = pneg %p148
      %p211 = pneg %p145
      %s212 = smul.u32 32, %s17
      %p213 = scmp.lt.s32.totalorder %s212, 255
      %s214 = scalar_select %p213, %s212, 255
      %s215 = smul.addr %s214, 8
      %s216 = scalar_lea.vmem %s5, %s215
      %s217 = smul.u32 32, %s17
      %p218 = scmp.lt.s32.totalorder %s217, 255
      %s219 = scalar_select %p218, %s217, 255
      %s220 = smul.addr %s219, 8
      %s221 = scalar_lea.vmem %s1, %s220
      %s222 = smul.u32 32, %s17
      %s223 = smul.u32 32, %s17
      %p224 = scmp.lt.s32.totalorder %s223, 255
      %s225 = scalar_select %p224, %s223, 255
      %s226 = smul.addr %s225, 8
      %s227 = scalar_lea.vmem %s5, %s226
      %s228 = smul.u32 32, %s17
      %s229 = sld [smem:[#allocation2]]
      %s230 = ssub.f32 0.0, %s229
      %v231 = vld [vmem:[%s221] sm:$0xff]
      %v232 = vld [vmem:[%s221 + $0x8] sm:$0xff]
      %v233 = vld [vmem:[%s221 + $0x10] sm:$0xff]
      %v234 = vld [vmem:[%s221 + $0x18] sm:$0xff]
      %v235 = vld [vmem:[%s221 + $0x20] sm:$0xff]
      %v236 = vld [vmem:[%s221 + $0x28] sm:$0xff]
      %v237 = vld [vmem:[%s221 + $0x30] sm:$0xff]
      %v238 = vld [vmem:[%s221 + $0x38] sm:$0xff]
      %v239 = vld [vmem:[%s221 + $0x40] sm:$0xff]
      %v240 = vld [vmem:[%s221 + $0x48] sm:$0xff]
      %v241 = vld [vmem:[%s221 + $0x50] sm:$0xff]
      %v242 = vld [vmem:[%s221 + $0x58] sm:$0xff]
      %v243 = vld [vmem:[%s221 + $0x60] sm:$0xff]
      %v244 = vld [vmem:[%s221 + $0x68] sm:$0xff]
      %v245 = vld [vmem:[%s221 + $0x70] sm:$0xff]
      %v246 = vld [vmem:[%s221 + $0x78] sm:$0xff]
      %v247 = vld [vmem:[%s221 + $0x80] sm:$0xff]
      %v248 = vld [vmem:[%s221 + $0x88] sm:$0xff]
      %v249 = vld [vmem:[%s221 + $0x90] sm:$0xff]
      %v250 = vld [vmem:[%s221 + $0x98] sm:$0xff]
      %v251 = vld [vmem:[%s221 + $0xa0] sm:$0xff]
      %v252 = vld [vmem:[%s221 + $0xa8] sm:$0xff]
      %v253 = vld [vmem:[%s221 + $0xb0] sm:$0xff]
      %v254 = vld [vmem:[%s221 + $0xb8] sm:$0xff]
      %v255 = vld [vmem:[%s221 + $0xc0] sm:$0xff]
      %v256 = vld [vmem:[%s221 + $0xc8] sm:$0xff]
      %v257 = vld [vmem:[%s221 + $0xd0] sm:$0xff]
      %v258 = vld [vmem:[%s221 + $0xd8] sm:$0xff]
      %v259 = vld [vmem:[%s221 + $0xe0] sm:$0xff]
      %v260 = vld [vmem:[%s221 + $0xe8] sm:$0xff]
      %v261 = vld [vmem:[%s221 + $0xf0] sm:$0xff]
      %v262 = vld [vmem:[%s221 + $0xf8] sm:$0xff]
      %v263 = vld [vmem:[%s2] sm:$0xf]
      %vm264 = vcmask 31744
      %v266 = vsel %vm264, %v231, 0
      %v269 = vsel %vm264, %v232, 0
      %v272 = vsel %vm264, %v233, 0
      %v275 = vsel %vm264, %v234, 0
      %v278 = vsel %vm264, %v235, 0
      %v281 = vsel %vm264, %v236, 0
      %v284 = vsel %vm264, %v237, 0
      %v287 = vsel %vm264, %v238, 0
      %v290 = vsel %vm264, %v239, 0
      %v293 = vsel %vm264, %v240, 0
      %v296 = vsel %vm264, %v241, 0
      %v299 = vsel %vm264, %v242, 0
      %v302 = vsel %vm264, %v243, 0
      %v305 = vsel %vm264, %v244, 0
      %v308 = vsel %vm264, %v245, 0
      %v311 = vsel %vm264, %v246, 0
      %v314 = vsel %vm264, %v247, 0
      %v317 = vsel %vm264, %v248, 0
      %v320 = vsel %vm264, %v249, 0
      %v323 = vsel %vm264, %v250, 0
      %v326 = vsel %vm264, %v251, 0
      %v329 = vsel %vm264, %v252, 0
      %v332 = vsel %vm264, %v253, 0
      %v335 = vsel %vm264, %v254, 0
      %v338 = vsel %vm264, %v255, 0
      %v341 = vsel %vm264, %v256, 0
      %v344 = vsel %vm264, %v257, 0
      %v347 = vsel %vm264, %v258, 0
      %v350 = vsel %vm264, %v259, 0
      %v353 = vsel %vm264, %v260, 0
      %v356 = vsel %vm264, %v261, 0
      %v359 = vsel %vm264, %v262, 0
      %vm361 = vcmask 1043456
      %v363 = vsel %vm361, %v263, 0
      %365 = vmatpush.msra.mxu0 0.0
      %366 = vmatpush.msra.mxu0 0.0
      %367 = vmatpush.msra.mxu0 0.0
      %368 = vmatpush.msra.mxu0 0.0
      %369 = vmatpush.msra.mxu0 0.0
      %370 = vmatpush.msra.mxu0 0.0
      %371 = vmatpush.msra.mxu0 0.0
      %372 = vmatpush.msra.mxu0 0.0
      %373 = vmatpush.msra.mxu0 0.0
      %374 = vmatpush.msra.mxu0 0.0
      %375 = vmatpush.msra.mxu0 0.0
      %376 = vmatpush.msra.mxu0 0.0
      %377 = vmatpush.msra.mxu0 0.0
      %378 = vmatpush.msra.mxu0 0.0
      %379 = vmatpush.msra.mxu0 0.0
      %380 = vmatpush.msra.mxu0 %v363
      %381 = vmatmul.f32.gmra.mxu0 %v266
      %v382 = vpop.f32.mrf.mxu0
      %v383 = vadd.f32 0.0, %v382
      %384 = vmatmul.f32.gmra.mxu0 %v269
      %v385 = vpop.f32.mrf.mxu0
      %v386 = vadd.f32 0.0, %v385
      %387 = vmatmul.f32.gmra.mxu0 %v272
      %v388 = vpop.f32.mrf.mxu0
      %v389 = vadd.f32 0.0, %v388
      %390 = vmatmul.f32.gmra.mxu0 %v275
      %v391 = vpop.f32.mrf.mxu0
      %v392 = vadd.f32 0.0, %v391
      %393 = vmatmul.f32.gmra.mxu0 %v278
      %v394 = vpop.f32.mrf.mxu0
      %v395 = vadd.f32 0.0, %v394
      %396 = vmatmul.f32.gmra.mxu0 %v281
      %v397 = vpop.f32.mrf.mxu0
      %v398 = vadd.f32 0.0, %v397
      %399 = vmatmul.f32.gmra.mxu0 %v284
      %v400 = vpop.f32.mrf.mxu0
      %v401 = vadd.f32 0.0, %v400
      %402 = vmatmul.f32.gmra.mxu0 %v287
      %v403 = vpop.f32.mrf.mxu0
      %v404 = vadd.f32 0.0, %v403
      %405 = vmatmul.f32.gmra.mxu0 %v290
      %v406 = vpop.f32.mrf.mxu0
      %v407 = vadd.f32 0.0, %v406
      %408 = vmatmul.f32.gmra.mxu0 %v293
      %v409 = vpop.f32.mrf.mxu0
      %v410 = vadd.f32 0.0, %v409
      %411 = vmatmul.f32.gmra.mxu0 %v296
      %v412 = vpop.f32.mrf.mxu0
      %v413 = vadd.f32 0.0, %v412
      %414 = vmatmul.f32.gmra.mxu0 %v299
      %v415 = vpop.f32.mrf.mxu0
      %v416 = vadd.f32 0.0, %v415
      %417 = vmatmul.f32.gmra.mxu0 %v302
      %v418 = vpop.f32.mrf.mxu0
      %v419 = vadd.f32 0.0, %v418
      %420 = vmatmul.f32.gmra.mxu0 %v305
      %v421 = vpop.f32.mrf.mxu0
      %v422 = vadd.f32 0.0, %v421
      %423 = vmatmul.f32.gmra.mxu0 %v308
      %v424 = vpop.f32.mrf.mxu0
      %v425 = vadd.f32 0.0, %v424
      %426 = vmatmul.f32.gmra.mxu0 %v311
      %v427 = vpop.f32.mrf.mxu0
      %v428 = vadd.f32 0.0, %v427
      %429 = vmatmul.f32.gmra.mxu0 %v314
      %v430 = vpop.f32.mrf.mxu0
      %v431 = vadd.f32 0.0, %v430
      %432 = vmatmul.f32.gmra.mxu0 %v317
      %v433 = vpop.f32.mrf.mxu0
      %v434 = vadd.f32 0.0, %v433
      %435 = vmatmul.f32.gmra.mxu0 %v320
      %v436 = vpop.f32.mrf.mxu0
      %v437 = vadd.f32 0.0, %v436
      %438 = vmatmul.f32.gmra.mxu0 %v323
      %v439 = vpop.f32.mrf.mxu0
      %v440 = vadd.f32 0.0, %v439
      %441 = vmatmul.f32.gmra.mxu0 %v326
      %v442 = vpop.f32.mrf.mxu0
      %v443 = vadd.f32 0.0, %v442
      %444 = vmatmul.f32.gmra.mxu0 %v329
      %v445 = vpop.f32.mrf.mxu0
      %v446 = vadd.f32 0.0, %v445
      %447 = vmatmul.f32.gmra.mxu0 %v332
      %v448 = vpop.f32.mrf.mxu0
      %v449 = vadd.f32 0.0, %v448
      %450 = vmatmul.f32.gmra.mxu0 %v335
      %v451 = vpop.f32.mrf.mxu0
      %v452 = vadd.f32 0.0, %v451
      %453 = vmatmul.f32.gmra.mxu0 %v338
      %v454 = vpop.f32.mrf.mxu0
      %v455 = vadd.f32 0.0, %v454
      %456 = vmatmul.f32.gmra.mxu0 %v341
      %v457 = vpop.f32.mrf.mxu0
      %v458 = vadd.f32 0.0, %v457
      %459 = vmatmul.f32.gmra.mxu0 %v344
      %v460 = vpop.f32.mrf.mxu0
      %v461 = vadd.f32 0.0, %v460
      %462 = vmatmul.f32.gmra.mxu0 %v347
      %v463 = vpop.f32.mrf.mxu0
      %v464 = vadd.f32 0.0, %v463
      %465 = vmatmul.f32.gmra.mxu0 %v350
      %v466 = vpop.f32.mrf.mxu0
      %v467 = vadd.f32 0.0, %v466
      %468 = vmatmul.f32.gmra.mxu0 %v353
      %v469 = vpop.f32.mrf.mxu0
      %v470 = vadd.f32 0.0, %v469
      %471 = vmatmul.f32.gmra.mxu0 %v356
      %v472 = vpop.f32.mrf.mxu0
      %v473 = vadd.f32 0.0, %v472
      %474 = vmatmul.f32.gmra.mxu0 %v359
      %v475 = vpop.f32.mrf.mxu0
      %v476 = vadd.f32 0.0, %v475
      %477 = vdwg.mxu0
      %v478 = vld [vmem:[%s3] sm:$0x1]
      %v480 = vperm.slane %v478, 0
      %v482 = vsub.f32 %v383, %v480
      %v483 = vsub.f32 %v386, %v480
      %v484 = vsub.f32 %v389, %v480
      %v485 = vsub.f32 %v392, %v480
      %v486 = vsub.f32 %v395, %v480
      %v487 = vsub.f32 %v398, %v480
      %v488 = vsub.f32 %v401, %v480
      %v489 = vsub.f32 %v404, %v480
      %v490 = vsub.f32 %v407, %v480
      %v491 = vsub.f32 %v410, %v480
      %v492 = vsub.f32 %v413, %v480
      %v493 = vsub.f32 %v416, %v480
      %v494 = vsub.f32 %v419, %v480
      %v495 = vsub.f32 %v422, %v480
      %v496 = vsub.f32 %v425, %v480
      %v497 = vsub.f32 %v428, %v480
      %v498 = vsub.f32 %v431, %v480
      %v499 = vsub.f32 %v434, %v480
      %v500 = vsub.f32 %v437, %v480
      %v501 = vsub.f32 %v440, %v480
      %v502 = vsub.f32 %v443, %v480
      %v503 = vsub.f32 %v446, %v480
      %v504 = vsub.f32 %v449, %v480
      %v505 = vsub.f32 %v452, %v480
      %v506 = vsub.f32 %v455, %v480
      %v507 = vsub.f32 %v458, %v480
      %v508 = vsub.f32 %v461, %v480
      %v509 = vsub.f32 %v464, %v480
      %v510 = vsub.f32 %v467, %v480
      %v511 = vsub.f32 %v470, %v480
      %v512 = vsub.f32 %v473, %v480
      %v513 = vsub.f32 %v476, %v480
      %v514 = vmul.f32 %v482, %v482
      %v515 = vmul.f32 %v483, %v483
      %v516 = vmul.f32 %v484, %v484
      %v517 = vmul.f32 %v485, %v485
      %v518 = vmul.f32 %v486, %v486
      %v519 = vmul.f32 %v487, %v487
      %v520 = vmul.f32 %v488, %v488
      %v521 = vmul.f32 %v489, %v489
      %v522 = vmul.f32 %v490, %v490
      %v523 = vmul.f32 %v491, %v491
      %v524 = vmul.f32 %v492, %v492
      %v525 = vmul.f32 %v493, %v493
      %v526 = vmul.f32 %v494, %v494
      %v527 = vmul.f32 %v495, %v495
      %v528 = vmul.f32 %v496, %v496
      %v529 = vmul.f32 %v497, %v497
      %v530 = vmul.f32 %v498, %v498
      %v531 = vmul.f32 %v499, %v499
      %v532 = vmul.f32 %v500, %v500
      %v533 = vmul.f32 %v501, %v501
      %v534 = vmul.f32 %v502, %v502
      %v535 = vmul.f32 %v503, %v503
      %v536 = vmul.f32 %v504, %v504
      %v537 = vmul.f32 %v505, %v505
      %v538 = vmul.f32 %v506, %v506
      %v539 = vmul.f32 %v507, %v507
      %v540 = vmul.f32 %v508, %v508
      %v541 = vmul.f32 %v509, %v509
      %v542 = vmul.f32 %v510, %v510
      %v543 = vmul.f32 %v511, %v511
      %v544 = vmul.f32 %v512, %v512
      %v545 = vmul.f32 %v513, %v513
      %v546 = vstv %s230
      %v547 = vmul.f32 %v514, %v546
      %v548 = vmul.f32 %v515, %v546
      %v549 = vmul.f32 %v516, %v546
      %v550 = vmul.f32 %v517, %v546
      %v551 = vmul.f32 %v518, %v546
      %v552 = vmul.f32 %v519, %v546
      %v553 = vmul.f32 %v520, %v546
      %v554 = vmul.f32 %v521, %v546
      %v555 = vmul.f32 %v522, %v546
      %v556 = vmul.f32 %v523, %v546
      %v557 = vmul.f32 %v524, %v546
      %v558 = vmul.f32 %v525, %v546
      %v559 = vmul.f32 %v526, %v546
      %v560 = vmul.f32 %v527, %v546
      %v561 = vmul.f32 %v528, %v546
      %v562 = vmul.f32 %v529, %v546
      %v563 = vmul.f32 %v530, %v546
      %v564 = vmul.f32 %v531, %v546
      %v565 = vmul.f32 %v532, %v546
      %v566 = vmul.f32 %v533, %v546
      %v567 = vmul.f32 %v534, %v546
      %v568 = vmul.f32 %v535, %v546
      %v569 = vmul.f32 %v536, %v546
      %v570 = vmul.f32 %v537, %v546
      %v571 = vmul.f32 %v538, %v546
      %v572 = vmul.f32 %v539, %v546
      %v573 = vmul.f32 %v540, %v546
      %v574 = vmul.f32 %v541, %v546
      %v575 = vmul.f32 %v542, %v546
      %v576 = vmul.f32 %v543, %v546
      %v577 = vmul.f32 %v544, %v546
      %v578 = vmul.f32 %v545, %v546
      %v579 = vmul.f32 %v547, 1.442695
      %v580 = vpow.pop %v579
      %v581 = vmul.f32 %v548, 1.442695
      %v582 = vpow.pop %v581
      %v583 = vmul.f32 %v549, 1.442695
      %v584 = vpow.pop %v583
      %v585 = vmul.f32 %v550, 1.442695
      %v586 = vpow.pop %v585
      %v587 = vmul.f32 %v551, 1.442695
      %v588 = vpow.pop %v587
      %v589 = vmul.f32 %v552, 1.442695
      %v590 = vpow.pop %v589
      %v591 = vmul.f32 %v553, 1.442695
      %v592 = vpow.pop %v591
      %v593 = vmul.f32 %v554, 1.442695
      %v594 = vpow.pop %v593
      %v595 = vmul.f32 %v555, 1.442695
      %v596 = vpow.pop %v595
      %v597 = vmul.f32 %v556, 1.442695
      %v598 = vpow.pop %v597
      %v599 = vmul.f32 %v557, 1.442695
      %v600 = vpow.pop %v599
      %v601 = vmul.f32 %v558, 1.442695
      %v602 = vpow.pop %v601
      %v603 = vmul.f32 %v559, 1.442695
      %v604 = vpow.pop %v603
      %v605 = vmul.f32 %v560, 1.442695
      %v606 = vpow.pop %v605
      %v607 = vmul.f32 %v561, 1.442695
      %v608 = vpow.pop %v607
      %v609 = vmul.f32 %v562, 1.442695
      %v610 = vpow.pop %v609
      %v611 = vmul.f32 %v563, 1.442695
      %v612 = vpow.pop %v611
      %v613 = vmul.f32 %v564, 1.442695
      %v614 = vpow.pop %v613
      %v615 = vmul.f32 %v565, 1.442695
      %v616 = vpow.pop %v615
      %v617 = vmul.f32 %v566, 1.442695
      %v618 = vpow.pop %v617
      %v619 = vmul.f32 %v567, 1.442695
      %v620 = vpow.pop %v619
      %v621 = vmul.f32 %v568, 1.442695
      %v622 = vpow.pop %v621
      %v623 = vmul.f32 %v569, 1.442695
      %v624 = vpow.pop %v623
      %v625 = vmul.f32 %v570, 1.442695
      %v626 = vpow.pop %v625
      %v627 = vmul.f32 %v571, 1.442695
      %v628 = vpow.pop %v627
      %v629 = vmul.f32 %v572, 1.442695
      %v630 = vpow.pop %v629
      %v631 = vmul.f32 %v573, 1.442695
      %v632 = vpow.pop %v631
      %v633 = vmul.f32 %v574, 1.442695
      %v634 = vpow.pop %v633
      %v635 = vmul.f32 %v575, 1.442695
      %v636 = vpow.pop %v635
      %v637 = vmul.f32 %v576, 1.442695
      %v638 = vpow.pop %v637
      %v639 = vmul.f32 %v577, 1.442695
      %v640 = vpow.pop %v639
      %v641 = vmul.f32 %v578, 1.442695
      %v642 = vpow.pop %v641
      %v643 = vld [vmem:[%s4] sm:$0xff]
      %v644 = vld [vmem:[%s4 + $0x8] sm:$0xff]
      %v645 = vld [vmem:[%s4 + $0x10] sm:$0xff]
      %v646 = vld [vmem:[%s4 + $0x18] sm:$0xff]
      %v647 = vld [vmem:[%s4 + $0x20] sm:$0xff]
      %v648 = vld [vmem:[%s4 + $0x28] sm:$0xff]
      %v649 = vld [vmem:[%s4 + $0x30] sm:$0xff]
      %v650 = vld [vmem:[%s4 + $0x38] sm:$0xff]
      %vm651 = vcmask 523264
      %v653 = vsel %vm651, %v580, 0
      %v656 = vsel %vm651, %v582, 0
      %v659 = vsel %vm651, %v584, 0
      %v662 = vsel %vm651, %v586, 0
      %v665 = vsel %vm651, %v588, 0
      %v668 = vsel %vm651, %v590, 0
      %v671 = vsel %vm651, %v592, 0
      %v674 = vsel %vm651, %v594, 0
      %v677 = vsel %vm651, %v596, 0
      %v680 = vsel %vm651, %v598, 0
      %v683 = vsel %vm651, %v600, 0
      %v686 = vsel %vm651, %v602, 0
      %v689 = vsel %vm651, %v604, 0
      %v692 = vsel %vm651, %v606, 0
      %v695 = vsel %vm651, %v608, 0
      %v698 = vsel %vm651, %v610, 0
      %v701 = vsel %vm651, %v612, 0
      %v704 = vsel %vm651, %v614, 0
      %v707 = vsel %vm651, %v616, 0
      %v710 = vsel %vm651, %v618, 0
      %v713 = vsel %vm651, %v620, 0
      %v716 = vsel %vm651, %v622, 0
      %v719 = vsel %vm651, %v624, 0
      %v722 = vsel %vm651, %v626, 0
      %v725 = vsel %vm651, %v628, 0
      %v728 = vsel %vm651, %v630, 0
      %v731 = vsel %vm651, %v632, 0
      %v734 = vsel %vm651, %v634, 0
      %v737 = vsel %vm651, %v636, 0
      %v740 = vsel %vm651, %v638, 0
      %v743 = vsel %vm651, %v640, 0
      %v746 = vsel %vm651, %v642, 0
      %748 = vmatpush.msra.mxu0 0.0
      %749 = vmatpush.msra.mxu0 0.0
      %750 = vmatpush.msra.mxu0 0.0
      %751 = vmatpush.msra.mxu0 0.0
      %752 = vmatpush.msra.mxu0 0.0
      %753 = vmatpush.msra.mxu0 0.0
      %754 = vmatpush.msra.mxu0 0.0
      %755 = vmatpush.msra.mxu0 0.0
      %756 = vmatpush.msra.mxu0 %v650
      %757 = vmatpush.msra.mxu0 %v649
      %758 = vmatpush.msra.mxu0 %v648
      %759 = vmatpush.msra.mxu0 %v647
      %760 = vmatpush.msra.mxu0 %v646
      %761 = vmatpush.msra.mxu0 %v645
      %762 = vmatpush.msra.mxu0 %v644
      %763 = vmatpush.msra.mxu0 %v643
      %764 = vmatmul.f32.gmra.mxu0 %v653
      %v765 = vpop.f32.mrf.mxu0
      %v766 = vadd.f32 0.0, %v765
      %767 = vmatmul.f32.gmra.mxu0 %v656
      %v768 = vpop.f32.mrf.mxu0
      %v769 = vadd.f32 0.0, %v768
      %770 = vmatmul.f32.gmra.mxu0 %v659
      %v771 = vpop.f32.mrf.mxu0
      %v772 = vadd.f32 0.0, %v771
      %773 = vmatmul.f32.gmra.mxu0 %v662
      %v774 = vpop.f32.mrf.mxu0
      %v775 = vadd.f32 0.0, %v774
      %776 = vmatmul.f32.gmra.mxu0 %v665
      %v777 = vpop.f32.mrf.mxu0
      %v778 = vadd.f32 0.0, %v777
      %779 = vmatmul.f32.gmra.mxu0 %v668
      %v780 = vpop.f32.mrf.mxu0
      %v781 = vadd.f32 0.0, %v780
      %782 = vmatmul.f32.gmra.mxu0 %v671
      %v783 = vpop.f32.mrf.mxu0
      %v784 = vadd.f32 0.0, %v783
      %785 = vmatmul.f32.gmra.mxu0 %v674
      %v786 = vpop.f32.mrf.mxu0
      %v787 = vadd.f32 0.0, %v786
      %788 = vmatmul.f32.gmra.mxu0 %v677
      %v789 = vpop.f32.mrf.mxu0
      %v790 = vadd.f32 0.0, %v789
      %791 = vmatmul.f32.gmra.mxu0 %v680
      %v792 = vpop.f32.mrf.mxu0
      %v793 = vadd.f32 0.0, %v792
      %794 = vmatmul.f32.gmra.mxu0 %v683
      %v795 = vpop.f32.mrf.mxu0
      %v796 = vadd.f32 0.0, %v795
      %797 = vmatmul.f32.gmra.mxu0 %v686
      %v798 = vpop.f32.mrf.mxu0
      %v799 = vadd.f32 0.0, %v798
      %800 = vmatmul.f32.gmra.mxu0 %v689
      %v801 = vpop.f32.mrf.mxu0
      %v802 = vadd.f32 0.0, %v801
      %803 = vmatmul.f32.gmra.mxu0 %v692
      %v804 = vpop.f32.mrf.mxu0
      %v805 = vadd.f32 0.0, %v804
      %806 = vmatmul.f32.gmra.mxu0 %v695
      %v807 = vpop.f32.mrf.mxu0
      %v808 = vadd.f32 0.0, %v807
      %809 = vmatmul.f32.gmra.mxu0 %v698
      %v810 = vpop.f32.mrf.mxu0
      %v811 = vadd.f32 0.0, %v810
      %812 = vmatmul.f32.gmra.mxu0 %v701
      %v813 = vpop.f32.mrf.mxu0
      %v814 = vadd.f32 0.0, %v813
      %815 = vmatmul.f32.gmra.mxu0 %v704
      %v816 = vpop.f32.mrf.mxu0
      %v817 = vadd.f32 0.0, %v816
      %818 = vmatmul.f32.gmra.mxu0 %v707
      %v819 = vpop.f32.mrf.mxu0
      %v820 = vadd.f32 0.0, %v819
      %821 = vmatmul.f32.gmra.mxu0 %v710
      %v822 = vpop.f32.mrf.mxu0
      %v823 = vadd.f32 0.0, %v822
      %824 = vmatmul.f32.gmra.mxu0 %v713
      %v825 = vpop.f32.mrf.mxu0
      %v826 = vadd.f32 0.0, %v825
      %827 = vmatmul.f32.gmra.mxu0 %v716
      %v828 = vpop.f32.mrf.mxu0
      %v829 = vadd.f32 0.0, %v828
      %830 = vmatmul.f32.gmra.mxu0 %v719
      %v831 = vpop.f32.mrf.mxu0
      %v832 = vadd.f32 0.0, %v831
      %833 = vmatmul.f32.gmra.mxu0 %v722
      %v834 = vpop.f32.mrf.mxu0
      %v835 = vadd.f32 0.0, %v834
      %836 = vmatmul.f32.gmra.mxu0 %v725
      %v837 = vpop.f32.mrf.mxu0
      %v838 = vadd.f32 0.0, %v837
      %839 = vmatmul.f32.gmra.mxu0 %v728
      %v840 = vpop.f32.mrf.mxu0
      %v841 = vadd.f32 0.0, %v840
      %842 = vmatmul.f32.gmra.mxu0 %v731
      %v843 = vpop.f32.mrf.mxu0
      %v844 = vadd.f32 0.0, %v843
      %845 = vmatmul.f32.gmra.mxu0 %v734
      %v846 = vpop.f32.mrf.mxu0
      %v847 = vadd.f32 0.0, %v846
      %848 = vmatmul.f32.gmra.mxu0 %v737
      %v849 = vpop.f32.mrf.mxu0
      %v850 = vadd.f32 0.0, %v849
      %851 = vmatmul.f32.gmra.mxu0 %v740
      %v852 = vpop.f32.mrf.mxu0
      %v853 = vadd.f32 0.0, %v852
      %854 = vmatmul.f32.gmra.mxu0 %v743
      %v855 = vpop.f32.mrf.mxu0
      %v856 = vadd.f32 0.0, %v855
      %857 = vmatmul.f32.gmra.mxu0 %v746
      %v858 = vpop.f32.mrf.mxu0
      %v859 = vadd.f32 0.0, %v858
      %860 = vdwg.mxu0
      %861 = vst [vmem:[%s227] sm:$0xff] %v766
      %862 = vst [vmem:[%s227 + $0x8] sm:$0xff] %v769
      %863 = vst [vmem:[%s227 + $0x10] sm:$0xff] %v772
      %864 = vst [vmem:[%s227 + $0x18] sm:$0xff] %v775
      %865 = vst [vmem:[%s227 + $0x20] sm:$0xff] %v778
      %866 = vst [vmem:[%s227 + $0x28] sm:$0xff] %v781
      %867 = vst [vmem:[%s227 + $0x30] sm:$0xff] %v784
      %868 = vst [vmem:[%s227 + $0x38] sm:$0xff] %v787
      %869 = vst [vmem:[%s227 + $0x40] sm:$0xff] %v790
      %870 = vst [vmem:[%s227 + $0x48] sm:$0xff] %v793
      %871 = vst [vmem:[%s227 + $0x50] sm:$0xff] %v796
      %872 = vst [vmem:[%s227 + $0x58] sm:$0xff] %v799
      %873 = vst [vmem:[%s227 + $0x60] sm:$0xff] %v802
      %874 = vst [vmem:[%s227 + $0x68] sm:$0xff] %v805
      %875 = vst [vmem:[%s227 + $0x70] sm:$0xff] %v808
      %876 = vst [vmem:[%s227 + $0x78] sm:$0xff] %v811
      %877 = vst [vmem:[%s227 + $0x80] sm:$0xff] %v814
      %878 = vst [vmem:[%s227 + $0x88] sm:$0xff] %v817
      %879 = vst [vmem:[%s227 + $0x90] sm:$0xff] %v820
      %880 = vst [vmem:[%s227 + $0x98] sm:$0xff] %v823
      %881 = vst [vmem:[%s227 + $0xa0] sm:$0xff] %v826
      %882 = vst [vmem:[%s227 + $0xa8] sm:$0xff] %v829
      %883 = vst [vmem:[%s227 + $0xb0] sm:$0xff] %v832
      %884 = vst [vmem:[%s227 + $0xb8] sm:$0xff] %v835
      %885 = vst [vmem:[%s227 + $0xc0] sm:$0xff] %v838
      %886 = vst [vmem:[%s227 + $0xc8] sm:$0xff] %v841
      %887 = vst [vmem:[%s227 + $0xd0] sm:$0xff] %v844
      %888 = vst [vmem:[%s227 + $0xd8] sm:$0xff] %v847
      %889 = vst [vmem:[%s227 + $0xe0] sm:$0xff] %v850
      %890 = vst [vmem:[%s227 + $0xe8] sm:$0xff] %v853
      %891 = vst [vmem:[%s227 + $0xf0] sm:$0xff] %v856
      %892 = vst [vmem:[%s227 + $0xf8] sm:$0xff] %v859
      %s893 = smul.u32 32, %s17
      %p894 = scmp.lt.s32.totalorder %s893, 255
      %s895 = scalar_select %p894, %s893, 255
      %s896 = smul.addr %s895, 8
      %s897 = scalar_lea.vmem %s5, %s896
      // Predicated region
      $region41: #{rbf_r3_forward.1} parent=39 // pred_check
        %p898 = pneg %p145
      $region42: #{rbf_r3_forward.1} parent=39 // pred_check_branch
        %900 = sbr.rel (%p898) target = $region44
      $region43: #{rbf_r3_forward.1} parent=39 // pred_region
        %s901 = smul.u32 32, %s17
      $region44: #{rbf_r3_forward.1} parent=39 // pred_fallthru
        _
    $region40: #{rbf_r3_forward.1} parent=5 // pred_fallthru
      _
    %p902 = scmp.le.s32.totalorder 2, %s12
    // Predicated region
    $region45: #{rbf_r3_forward.1} parent=5 // pred_check
      %p903 = pneg %p902
    $region46: #{rbf_r3_forward.1} parent=5 // pred_check_branch
      %905 = sbr.rel (%p903) target = $region48
    $region47: #{rbf_r3_forward.1} parent=5 // pred_region
      %s906 = ssub.s32 %s12, 2
      // Predicated region
      $region49: #{rbf_r3_forward.1} parent=47 // pred_check
        %p907 = pneg %p151
      $region50: #{rbf_r3_forward.1} parent=47 // pred_check_branch
        %909 = sbr.rel (%p907) target = $region52
      $region51: #{rbf_r3_forward.1} parent=47 // pred_region
        %s910 = smul.u32 32, %s18
        %p911 = scmp.lt.s32.totalorder %s910, 255
        %s912 = scalar_select %p911, %s910, 255
        %s913 = smul.addr %s912, 8
        %s914 = scalar_lea.vmem %s5, %s913
      $region52: #{rbf_r3_forward.1} parent=47 // pred_fallthru
        _
    $region48: #{rbf_r3_forward.1} parent=5 // pred_fallthru
      _
  $region6: #{rbf_r3_forward.1} parent=0 // loop_footer
    %s16 = sadd.s32 1, %s12
  $region7: #{rbf_r3_forward.1} parent=0 // loop_footer_branch
    %11 = sbr.rel target = $region3
  $region8: #{rbf_r3_forward.1} parent=0 // loop_exit
    _

</llo_original>
